<compile_context>
chip_gen: v7x
topology: tpu7x:2x2x1
jax: 0.10.0
libtpu: 0.0.40
codegen_flags: <defaults>
</compile_context>

<pallas_src>
import functools
import math

import jax
import jax.numpy as jnp
from jax.experimental import pallas as pl
from jax.experimental.pallas import tpu as pltpu

_LANE = 128
_SUBLANE = 8
_MIB = 1 << 20


def layernorm_kernel(x_ref, scale_ref, shift_ref, o_ref, *, inv_n, eps):
    """One (row_tile, emb) block; normalize along the lane (last) axis."""
    x = x_ref[...].astype(jnp.float32)                         # (rt, emb)
    mean = jnp.sum(x, axis=-1, keepdims=True) * inv_n          # XLU reduce
    xc = x - mean
    var = jnp.sum(xc * xc, axis=-1, keepdims=True) * inv_n     # two-pass var
    inv_std = jax.lax.rsqrt(var + eps)                         # EUP
    scale = scale_ref[...].astype(jnp.float32)                 # (1, emb)
    shift = shift_ref[...].astype(jnp.float32)                 # (1, emb)
    o_ref[...] = (xc * inv_std * scale + shift).astype(o_ref.dtype)


def _chip_params():
    """(target_block_bytes, scoped_vmem_cap) derived from the local TPU."""
    vmem_cap = None
    try:
        vmem_cap = int(pltpu.get_tpu_info().vmem_capacity_bytes)
    except Exception:
        vmem_cap = None
    if vmem_cap is None:
        # Conservative fallback: assume v7x-like 64 MiB VMEM.
        return 4 * _MIB, 48 * _MIB
    if vmem_cap >= 96 * _MIB:
        # v5e / v6e: 128 MiB VMEM, slower HBM -> bigger blocks, higher cap.
        return 8 * _MIB, min(100 * _MIB, vmem_cap - 16 * _MIB)
    # v7x: 64 MiB VMEM per TC, 3.2 TB/s HBM -> 4 MiB blocks, leave headroom.
    return 4 * _MIB, max(32 * _MIB, (vmem_cap * 3) // 4)


def _choose_row_tile(rows, emb, itemsize, target_block_bytes):
    row_bytes = max(emb * itemsize, 1)
    rt = target_block_bytes // row_bytes
    rt = max(_SUBLANE, (int(rt) // _SUBLANE) * _SUBLANE)
    # Keep >= 2 tiles whenever rows allows two sublane-aligned tiles, so the
    # "parallel" row axis can shard over v7x's two TensorCores (negligible
    # extra per-step cost on single-TC chips).
    if rows >= 2 * _SUBLANE:
        half = -(-((rows + 1) // 2) // _SUBLANE) * _SUBLANE
        rt = min(rt, half)
    if rt >= rows:
        return rows
    return rt


def _vmem_need(row_tile, emb, itemsize):
    block_bytes = row_tile * emb * itemsize
    f32_block = row_tile * emb * 4
    # 2x double-buffered input + 2x output blocks, ~3 f32 temporaries,
    # params, slack.
    return 4 * block_bytes + 3 * f32_block + 4 * emb * itemsize + 4 * _MIB


def layernorm(x, scale, shift, *, eps=1e-5, row_tile=None):
    """x: (..., emb_dim); scale/shift: (emb_dim,). Matches torch LayerNorm fwd."""
    orig_shape = x.shape
    emb = orig_shape[-1]
    rows = math.prod(orig_shape[:-1]) if len(orig_shape) > 1 else 1
    itemsize = jnp.dtype(x.dtype).itemsize

    x2 = x.reshape(rows, emb)
    scale2 = scale.reshape(1, emb)
    shift2 = shift.reshape(1, emb)

    target_block_bytes, vmem_cap = _chip_params()

    if row_tile is None:
        row_tile = _choose_row_tile(rows, emb, itemsize, target_block_bytes)
    row_tile = int(row_tile)
    if row_tile >= rows:
        row_tile = rows                       # single full block (always legal)
    else:
        row_tile = max(_SUBLANE, (row_tile // _SUBLANE) * _SUBLANE)

    # Shrink if the working set would exceed the scoped-VMEM cap.
    while row_tile > _SUBLANE and _vmem_need(row_tile, emb, itemsize) > vmem_cap:
        row_tile = max(_SUBLANE, ((row_tile // 2) // _SUBLANE) * _SUBLANE)

    grid = (pl.cdiv(rows, row_tile),)

    vmem_limit = int(min(max(_vmem_need(row_tile, emb, itemsize), 16 * _MIB),
                         vmem_cap))

    cost = pl.CostEstimate(
        flops=9 * rows * emb,
        transcendentals=rows,
        bytes_accessed=2 * rows * emb * itemsize + 2 * emb * itemsize,
    )

    kernel = functools.partial(layernorm_kernel, inv_n=1.0 / emb, eps=eps)

    out = pl.pallas_call(
        kernel,
        out_shape=jax.ShapeDtypeStruct((rows, emb), x.dtype),
        grid_spec=pltpu.PrefetchScalarGridSpec(
            num_scalar_prefetch=0,
            grid=grid,
            in_specs=[
                pl.BlockSpec((row_tile, emb), lambda i: (i, 0)),
                # Constant block index -> scale/shift are not re-DMA'd per step.
                pl.BlockSpec((1, emb), lambda i: (0, 0)),
                pl.BlockSpec((1, emb), lambda i: (0, 0)),
            ],
            out_specs=pl.BlockSpec((row_tile, emb), lambda i: (i, 0)),
        ),
        compiler_params=pltpu.CompilerParams(
            # parallel row axis: no-op on v5e/v6e, shards tiles over v7x's 2 TCs.
            dimension_semantics=("parallel",),
            vmem_limit_bytes=vmem_limit,
        ),
        cost_estimate=cost,
    )(x2, scale2, shift2)

    return out.reshape(orig_shape)


def layernorm_ref(x, scale, shift, eps=1e-5):
    mean = jnp.mean(x, axis=-1, keepdims=True)
    var = jnp.mean((x - mean) ** 2, axis=-1, keepdims=True)
    return scale * (x - mean) / jnp.sqrt(var + eps) + shift


if __name__ == "__main__":
    key = jax.random.PRNGKey(0)
    k0, k1, k2 = jax.random.split(key, 3)

    # 1) Lane-dense production-like layout (emb multiple of 128).
    batch, seq, emb_dim = 2, 8, 128
    scale = jnp.ones((emb_dim,), dtype=jnp.float32)   # nn.Parameter(torch.ones)
    shift = jnp.zeros((emb_dim,), dtype=jnp.float32)  # nn.Parameter(torch.zeros)
    x = jax.random.normal(k0, (batch, seq, emb_dim), dtype=jnp.float32)

    out = jax.block_until_ready(layernorm(x, scale, shift))
    ref = layernorm_ref(x, scale, shift)
    assert out.shape == x.shape and out.dtype == x.dtype
    assert jnp.max(jnp.abs(out - ref)) < 1e-5

    # 2) emb < 128 exercises the unpadded narrow-lane path.
    emb_small = 32
    scale_s = jnp.ones((emb_small,), dtype=jnp.float32)
    shift_s = jnp.zeros((emb_small,), dtype=jnp.float32)
    x_s = jax.random.normal(k1, (batch, seq, emb_small), dtype=jnp.float32)

    out_s = jax.block_until_ready(layernorm(x_s, scale_s, shift_s))
    ref_s = layernorm_ref(x_s, scale_s, shift_s)
    assert out_s.shape == x_s.shape and out_s.dtype == x_s.dtype
    assert jnp.max(jnp.abs(out_s - ref_s)) < 1e-5

    # 3) Ragged grid: rows % row_tile != 0 and emb % 128 != 0, no wrapper padding.
    emb_r = 96
    scale_r = jnp.ones((emb_r,), dtype=jnp.float32)
    shift_r = jnp.zeros((emb_r,), dtype=jnp.float32)
    x_r = jax.random.normal(k2, (3, 5, emb_r), dtype=jnp.float32)  # rows = 15

    out_r = jax.block_until_ready(layernorm(x_r, scale_r, shift_r, row_tile=8))
    ref_r = layernorm_ref(x_r, scale_r, shift_r)
    assert out_r.shape == x_r.shape and out_r.dtype == x_r.dtype
    assert jnp.max(jnp.abs(out_r - ref_r)) < 1e-5

    print("KERNEL_OK")
</pallas_src>

<mosaic_0001>
module attributes {stable_mosaic.version = 11 : i64} {
  func.func @layernorm_kernel(%arg0: i32, %arg1: memref<8x128xf32, #tpu.memory_space<vmem>>, %arg2: memref<1x128xf32, #tpu.memory_space<vmem>>, %arg3: memref<1x128xf32, #tpu.memory_space<vmem>>, %arg4: memref<8x128xf32, #tpu.memory_space<vmem>>) attributes {dimension_semantics = [#tpu.dimension_semantics<parallel>], iteration_bounds = array<i64: 2>, scalar_prefetch = 0 : i64, scratch_operands = 0 : i64, tpu.core_type = #tpu.core_type<tc>, window_params = [{transform_indices = @transform_0, window_bounds = array<i64: 8, 128>}, {pipeline_mode = #tpu.pipeline_mode<synchronous>, transform_indices = @transform_1, window_bounds = array<i64: 1, 128>}, {pipeline_mode = #tpu.pipeline_mode<synchronous>, transform_indices = @transform_2, window_bounds = array<i64: 1, 128>}, {transform_indices = @transform_3, window_bounds = array<i64: 8, 128>}]} {
    %c0 = arith.constant 0 : index
    %c0_0 = arith.constant 0 : index
    %0 = vector.load %arg1[%c0, %c0_0] : memref<8x128xf32, #tpu.memory_space<vmem>>, vector<8x128xf32>
    %cst = arith.constant dense<0.000000e+00> : vector<8xf32>
    %1 = vector.multi_reduction <add>, %0, %cst [1] : vector<8x128xf32> to vector<8xf32>
    %2 = vector.shape_cast %1 : vector<8xf32> to vector<8x1xf32>
    %cst_1 = arith.constant 7.812500e-03 : f32
    %3 = vector.broadcast %cst_1 : f32 to vector<8x1xf32>
    %4 = arith.mulf %2, %3 : vector<8x1xf32>
    %5 = vector.broadcast %4 : vector<8x1xf32> to vector<8x128xf32>
    %6 = arith.subf %0, %5 : vector<8x128xf32>
    %7 = arith.mulf %6, %6 : vector<8x128xf32>
    %cst_2 = arith.constant dense<0.000000e+00> : vector<8xf32>
    %8 = vector.multi_reduction <add>, %7, %cst_2 [1] : vector<8x128xf32> to vector<8xf32>
    %9 = vector.shape_cast %8 : vector<8xf32> to vector<8x1xf32>
    %cst_3 = arith.constant 7.812500e-03 : f32
    %10 = vector.broadcast %cst_3 : f32 to vector<8x1xf32>
    %11 = arith.mulf %9, %10 : vector<8x1xf32>
    %cst_4 = arith.constant 9.99999974E-6 : f32
    %12 = vector.broadcast %cst_4 : f32 to vector<8x1xf32>
    %13 = arith.addf %11, %12 : vector<8x1xf32>
    %14 = math.rsqrt %13 : vector<8x1xf32>
    %c0_5 = arith.constant 0 : index
    %c0_6 = arith.constant 0 : index
    %15 = vector.load %arg2[%c0_5, %c0_6] : memref<1x128xf32, #tpu.memory_space<vmem>>, vector<1x128xf32>
    %c0_7 = arith.constant 0 : index
    %c0_8 = arith.constant 0 : index
    %16 = vector.load %arg3[%c0_7, %c0_8] : memref<1x128xf32, #tpu.memory_space<vmem>>, vector<1x128xf32>
    %17 = vector.broadcast %14 : vector<8x1xf32> to vector<8x128xf32>
    %18 = arith.mulf %6, %17 : vector<8x128xf32>
    %19 = vector.broadcast %15 : vector<1x128xf32> to vector<8x128xf32>
    %20 = arith.mulf %18, %19 : vector<8x128xf32>
    %21 = vector.broadcast %16 : vector<1x128xf32> to vector<8x128xf32>
    %22 = arith.addf %20, %21 : vector<8x128xf32>
    %c0_9 = arith.constant 0 : index
    %c0_10 = arith.constant 0 : index
    %23 = vector.load %arg4[%c0_9, %c0_10] : memref<8x128xf32, #tpu.memory_space<vmem>>, vector<8x128xf32>
    tpu.vector_store %arg4[%c0_9, %c0_10], %22 {strides = array<i32>} : memref<8x128xf32, #tpu.memory_space<vmem>>, vector<8x128xf32>,
    return
  }
  func.func @transform_0(%arg0: i32) -> (i32, i32) {
    %c0_i32 = arith.constant 0 : i32
    %c0_i32_0 = arith.constant 0 : i32
    return %arg0, %c0_i32 : i32, i32
  }
  func.func @transform_1(%arg0: i32) -> (i32, i32) {
    %c0_i32 = arith.constant 0 : i32
    %c0_i32_0 = arith.constant 0 : i32
    %c0_i32_1 = arith.constant 0 : i32
    return %c0_i32, %c0_i32_0 : i32, i32
  }
  func.func @transform_2(%arg0: i32) -> (i32, i32) {
    %c0_i32 = arith.constant 0 : i32
    %c0_i32_0 = arith.constant 0 : i32
    %c0_i32_1 = arith.constant 0 : i32
    return %c0_i32, %c0_i32_0 : i32, i32
  }
  func.func @transform_3(%arg0: i32) -> (i32, i32) {
    %c0_i32 = arith.constant 0 : i32
    %c0_i32_0 = arith.constant 0 : i32
    return %arg0, %c0_i32 : i32, i32
  }
}

</mosaic_0001>

<llo_original>
// kernel: tpu_custom_call.1
$region0: #{tpu_custom_call.1}
  #allocation0 [shape = 'u32[]', space=smem, size = 0x4, offset = 0x4, fixed_abs, tag = 'smem constant byte address 0x4 - core index']
  #allocation1 [shape = 'u32[144,128]{1,0:T(1,128)}', space=vmem, size = 0x12000, scoped, tag = 'internal scratch']
  %s0 = inlined_call_operand.hbm [shape: f32[16,128], index: 0, kind: input, shape index: {}]
  %s1 = inlined_call_operand.vmem [shape: f32[1,128], index: 1, kind: input, shape index: {}]
  %s2 = inlined_call_operand.vmem [shape: f32[1,128], index: 2, kind: input, shape index: {}]
  %s3 = inlined_call_operand.hbm [shape: f32[16,128], index: 3, kind: output, shape index: {}]
  %s4 = sld [smem:[#allocation0]]
  $region49: #{tpu_custom_call.1} parent=0
    _
  %s6 = ssub.s32 1, %s4
  %s7 = scalar_select 0, %s6, %s4
  $region1: #{tpu_custom_call.1} parent=0
    #allocation2 [shape = 'u8[8192]{0}', space=vmem, size = 0x2000, scoped, tag = 'input window, operand 0']
    #allocation3 [shape = 's32[2]{0}', space=sflag, size = 0x8, scoped, tag = 'scoped memory for tpu_custom_call.1']
    #allocation4 [shape = 's32[2]{0}', space=sflag, size = 0x8, scoped, tag = 'scoped memory for tpu_custom_call.1']
    #allocation5 [shape = 'u8[8192]{0}', space=vmem, size = 0x2000, scoped, tag = 'output window, operand 0']
    %8 = vsyncpa [#allocation3], 0
    %s9 = scalar_lea.sflag [#allocation3], 1
    %10 = vsyncpa %s9, 0
    %11 = vsyncpa [#allocation4], 0
    %s12 = scalar_lea.sflag [#allocation4], 1
    %13 = vsyncpa %s12, 0
    loop: start=0, step=1, limit=4
    $region2: #{tpu_custom_call.1} parent=1 // loop_pre_header
      _
    $region3: #{tpu_custom_call.1} parent=1 // loop_header
      %s15 = sphi 0, %s19
      %p16 = scmp.ge.s32.totalorder %s15, 4
      %s25 = sphi 0, %s27
      %s28 = sphi 0, %s25
      %s29 = sphi 0, %s28
      %s45 = sphi 0, %s29
      %s49 = sphi 0, %s49
      %s51 = sphi 0, %s49
      %s52 = sphi 0, %s51
      %s66 = sphi 0, %s52
      %s70 = sphi 0, %s70
      %s72 = sphi 0, %s70
      %s73 = sphi 0, %s72
      %s87 = sphi 0, %s73
      %s93 = sphi 0, %s95
      %s96 = sphi 0, %s93
      %s97 = sphi 0, %s96
      %s113 = sphi 0, %s97
    $region4: #{tpu_custom_call.1} parent=1 // loop_header_branch
      %18 = sbr.rel (%p16) target = $region8
    $region5: #{tpu_custom_call.1} parent=1 // loop_body
      %s20 = ssub.s32 %s15, 1
      %s21 = ssub.s32 %s15, 2
      %s22 = sadd.s32 %s15, 1
      %s23 = ssub.s32 %s15, %s22
      %p24 = scmp.eq.s32.totalorder %s23, 0
      %s26 = sadd.s32 %s25, 1
      %s27 = scalar_select %p24, %s25, %s26
      %p30 = pneg %p24
      %p31 = scmp.eq.s32.totalorder %s15, 1
      %p32 = por %p30, %p31
      %p33 = scmp.ne.s32.totalorder %s25, %s28
      %p34 = scmp.eq.s32.totalorder %s15, 0
      %p35 = por %p33, %p34
      %p36 = scmp.ne.s32.totalorder %s25, %s28
      %p37 = scmp.eq.s32.totalorder %s20, 1
      %p38 = por %p36, %p37
      %p39 = scmp.ne.s32.totalorder %s28, %s29
      %p40 = scmp.eq.s32.totalorder %s20, 0
      %p41 = por %p39, %p40
      %p42 = scmp.ne.s32.totalorder %s28, %s29
      %p43 = scmp.eq.s32.totalorder %s21, 1
      %p44 = por %p42, %p43
      %p46 = scmp.ne.s32.totalorder %s29, %s45
      %p47 = scmp.eq.s32.totalorder %s21, 0
      %p48 = por %p46, %p47
      %s50 = sadd.s32 %s49, 1
      %p53 = scmp.eq.s32.totalorder %s15, 1
      %p54 = scmp.ne.s32.totalorder %s49, %s51
      %p55 = scmp.eq.s32.totalorder %s15, 0
      %p56 = por %p54, %p55
      %p57 = scmp.ne.s32.totalorder %s49, %s51
      %p58 = scmp.eq.s32.totalorder %s20, 1
      %p59 = por %p57, %p58
      %p60 = scmp.ne.s32.totalorder %s51, %s52
      %p61 = scmp.eq.s32.totalorder %s20, 0
      %p62 = por %p60, %p61
      %p63 = scmp.ne.s32.totalorder %s51, %s52
      %p64 = scmp.eq.s32.totalorder %s21, 1
      %p65 = por %p63, %p64
      %p67 = scmp.ne.s32.totalorder %s52, %s66
      %p68 = scmp.eq.s32.totalorder %s21, 0
      %p69 = por %p67, %p68
      %s71 = sadd.s32 %s70, 1
      %p74 = scmp.eq.s32.totalorder %s15, 1
      %p75 = scmp.ne.s32.totalorder %s70, %s72
      %p76 = scmp.eq.s32.totalorder %s15, 0
      %p77 = por %p75, %p76
      %p78 = scmp.ne.s32.totalorder %s70, %s72
      %p79 = scmp.eq.s32.totalorder %s20, 1
      %p80 = por %p78, %p79
      %p81 = scmp.ne.s32.totalorder %s72, %s73
      %p82 = scmp.eq.s32.totalorder %s20, 0
      %p83 = por %p81, %p82
      %p84 = scmp.ne.s32.totalorder %s72, %s73
      %p85 = scmp.eq.s32.totalorder %s21, 1
      %p86 = por %p84, %p85
      %p88 = scmp.ne.s32.totalorder %s73, %s87
      %p89 = scmp.eq.s32.totalorder %s21, 0
      %p90 = por %p88, %p89
      %s91 = ssub.s32 %s15, %s22
      %p92 = scmp.eq.s32.totalorder %s91, 0
      %s94 = sadd.s32 %s93, 1
      %s95 = scalar_select %p92, %s93, %s94
      %p98 = pneg %p92
      %p99 = scmp.eq.s32.totalorder %s15, 1
      %p100 = por %p98, %p99
      %p101 = scmp.ne.s32.totalorder %s93, %s96
      %p102 = scmp.eq.s32.totalorder %s15, 0
      %p103 = por %p101, %p102
      %p104 = scmp.ne.s32.totalorder %s93, %s96
      %p105 = scmp.eq.s32.totalorder %s20, 1
      %p106 = por %p104, %p105
      %p107 = scmp.ne.s32.totalorder %s96, %s97
      %p108 = scmp.eq.s32.totalorder %s20, 0
      %p109 = por %p107, %p108
      %p110 = scmp.ne.s32.totalorder %s96, %s97
      %p111 = scmp.eq.s32.totalorder %s21, 1
      %p112 = por %p110, %p111
      %p114 = scmp.ne.s32.totalorder %s97, %s113
      %p115 = scmp.eq.s32.totalorder %s21, 0
      %p116 = por %p114, %p115
      %p117 = scmp.le.s32.totalorder 1, %s15
      %p118 = scmp.lt.s32.totalorder %s15, 3
      %p119 = pnand %p117, %p118
      %p120 = pneg %p119
      // Predicated region
      $region9: #{tpu_custom_call.1} parent=5 // pred_check
        _
      $region10: #{tpu_custom_call.1} parent=5 // pred_check_branch
        %122 = sbr.rel (%p119) target = $region12
      $region11: #{tpu_custom_call.1} parent=5 // pred_region
        %s123 = ssub.s32 %s15, 1
        // Predicated region
        $region13: #{tpu_custom_call.1} parent=11 // pred_check
          %p124 = pneg %p62
        $region14: #{tpu_custom_call.1} parent=11 // pred_check_branch
          %126 = sbr.rel (%p124) target = $region16
        $region15: #{tpu_custom_call.1} parent=11 // pred_region
          _
        $region16: #{tpu_custom_call.1} parent=11 // pred_fallthru
          _
        // Predicated region
        $region17: #{tpu_custom_call.1} parent=11 // pred_check
          %p127 = pneg %p83
        $region18: #{tpu_custom_call.1} parent=11 // pred_check_branch
          %129 = sbr.rel (%p127) target = $region20
        $region19: #{tpu_custom_call.1} parent=11 // pred_region
          _
        $region20: #{tpu_custom_call.1} parent=11 // pred_fallthru
          _
      $region12: #{tpu_custom_call.1} parent=5 // pred_fallthru
        _
      %p130 = scmp.lt.s32.totalorder %s15, 2
      // Predicated region
      $region21: #{tpu_custom_call.1} parent=5 // pred_check
        %p131 = pneg %p130
      $region22: #{tpu_custom_call.1} parent=5 // pred_check_branch
        %133 = sbr.rel (%p131) target = $region24
      $region23: #{tpu_custom_call.1} parent=5 // pred_region
        // Predicated region
        $region25: #{tpu_custom_call.1} parent=23 // pred_check
          %p134 = pneg %p35
        $region26: #{tpu_custom_call.1} parent=23 // pred_check_branch
          %136 = sbr.rel (%p134) target = $region28
        $region27: #{tpu_custom_call.1} parent=23 // pred_region
          %s137 = sand.u32 %s25, 1
          %s138 = scalar_lea.sflag [#allocation3], %s137
          %s139 = sand.u32 %s25, 1
          %s140 = smul.addr %s139, 8
          %s141 = scalar_lea.vmem [#allocation2], %s140
          %s143 = ssub.s32 128, 128
          %144 = vsyncadd %s138, %s143
          %s145 = smul.addr %s15, 128
          %s146 = scalar_lea.hbm %s0, %s145
          %s148 = sshll.u32 %s141, 4
          %s149 = int_to_ptr.vmem [resolvable:$true] %s148
          %151 = dma.hbm_to_vmem [thread:$0]  %s146, 128, %s149, %s138
        $region28: #{tpu_custom_call.1} parent=23 // pred_fallthru
          _
      $region24: #{tpu_custom_call.1} parent=5 // pred_fallthru
        _
      %p152 = scmp.le.s32.totalorder 1, %s15
      %p153 = scmp.lt.s32.totalorder %s15, 3
      %p154 = pnand %p152, %p153
      %p155 = pneg %p154
      // Predicated region
      $region29: #{tpu_custom_call.1} parent=5 // pred_check
        _
      $region30: #{tpu_custom_call.1} parent=5 // pred_check_branch
        %157 = sbr.rel (%p154) target = $region32
      $region31: #{tpu_custom_call.1} parent=5 // pred_region
        %s158 = ssub.s32 %s15, 1
        %s159 = sand.u32 %s28, 1
        %s160 = scalar_lea.sflag [#allocation3], %s159
        %s161 = sand.u32 %s28, 1
        %s162 = smul.addr %s161, 8
        %s163 = scalar_lea.vmem [#allocation2], %s162
        // Predicated region
        $region33: #{tpu_custom_call.1} parent=31 // pred_check
          %p164 = pneg %p41
        $region34: #{tpu_custom_call.1} parent=31 // pred_check_branch
          %166 = sbr.rel (%p164) target = $region36
        $region35: #{tpu_custom_call.1} parent=31 // pred_region
          %167 = dma.done %s160, 128
        $region36: #{tpu_custom_call.1} parent=31 // pred_fallthru
          _
        %s168 = sand.u32 %s28, 1
        %s169 = scalar_lea.sflag [#allocation3], %s168
        %s170 = sand.u32 %s28, 1
        %s171 = smul.addr %s170, 8
        %s172 = scalar_lea.vmem [#allocation2], %s171
        %p173 = pneg %p41
        %p174 = pneg %p38
        %p175 = pneg %p62
        %p176 = pneg %p59
        %p177 = pneg %p83
        %p178 = pneg %p80
        %p179 = pneg %p109
        %p180 = pneg %p106
        %s181 = sand.u32 %s96, 1
        %s182 = scalar_lea.sflag [#allocation4], %s181
        %s183 = sand.u32 %s96, 1
        %s184 = smul.addr %s183, 8
        %s185 = scalar_lea.vmem [#allocation5], %s184
        %v186 = vld [vmem:[%s163] sm:$0xff]
        %187 = vadd.xlane.f32.xlu0 %v186
        %v188 = vpop.xlane.xlu0 %187
        %v189 = vmul.f32 %v188, 0.0078125
        %v190 = vsub.f32 %v186, %v189
        %v191 = vmul.f32 %v190, %v190
        %192 = vadd.xlane.f32.xlu0 %v191
        %v193 = vpop.xlane.xlu0 %192
        %v194 = vmul.f32 %v193, 0.0078125
        %v195 = vadd.f32 %v194, 1e-05
        %v196 = vrsqrt.pop %v195
        %v197 = vld [vmem:[%s1] sm:$0x1]
        %v198 = vld [vmem:[%s2] sm:$0x1]
        %v199 = vmul.f32 %v190, %v196
        %v201 = vlaneseq
        %v202 = vshrl.u32 %v201, 7
        %v203 = vsub.s32 0, %v202
        %v204 = vrot.slane %v197, %v203
        %v206 = vmul.f32 %v199, %v204
        %v208 = vlaneseq
        %v209 = vshrl.u32 %v208, 7
        %v210 = vsub.s32 0, %v209
        %v211 = vrot.slane %v198, %v210
        %v213 = vadd.f32 %v206, %v211
        %214 = vst [vmem:[%s185] sm:$0xff] %v213
        %s215 = sand.u32 %s96, 1
        %s216 = scalar_lea.sflag [#allocation4], %s215
        %s217 = sand.u32 %s96, 1
        %s218 = smul.addr %s217, 8
        %s219 = scalar_lea.vmem [#allocation5], %s218
        // Predicated region
        $region37: #{tpu_custom_call.1} parent=31 // pred_check
          %p220 = pneg %p106
        $region38: #{tpu_custom_call.1} parent=31 // pred_check_branch
          %222 = sbr.rel (%p220) target = $region40
        $region39: #{tpu_custom_call.1} parent=31 // pred_region
          %s224 = ssub.s32 128, 128
          %225 = vsyncadd %s216, %s224
          %s226 = smul.addr %s20, 128
          %s227 = scalar_lea.hbm %s3, %s226
          %s229 = sshll.u32 %s219, 4
          %s230 = int_to_ptr.vmem [resolvable:$true] %s229
          %232 = dma.vmem_to_hbm [thread:$0]  %s230, 128, %s227, %s216
        $region40: #{tpu_custom_call.1} parent=31 // pred_fallthru
          _
      $region32: #{tpu_custom_call.1} parent=5 // pred_fallthru
        _
      %p233 = scmp.le.s32.totalorder 2, %s15
      // Predicated region
      $region41: #{tpu_custom_call.1} parent=5 // pred_check
        %p234 = pneg %p233
      $region42: #{tpu_custom_call.1} parent=5 // pred_check_branch
        %236 = sbr.rel (%p234) target = $region44
      $region43: #{tpu_custom_call.1} parent=5 // pred_region
        %s237 = ssub.s32 %s15, 2
        // Predicated region
        $region45: #{tpu_custom_call.1} parent=43 // pred_check
          %p238 = pneg %p112
        $region46: #{tpu_custom_call.1} parent=43 // pred_check_branch
          %240 = sbr.rel (%p238) target = $region48
        $region47: #{tpu_custom_call.1} parent=43 // pred_region
          %s241 = sand.u32 %s97, 1
          %s242 = scalar_lea.sflag [#allocation4], %s241
          %s243 = sand.u32 %s97, 1
          %s244 = smul.addr %s243, 8
          %s245 = scalar_lea.vmem [#allocation5], %s244
          %246 = dma.done %s242, 128
        $region48: #{tpu_custom_call.1} parent=43 // pred_fallthru
          _
      $region44: #{tpu_custom_call.1} parent=5 // pred_fallthru
        _
    $region6: #{tpu_custom_call.1} parent=1 // loop_footer
      %s19 = sadd.s32 1, %s15
    $region7: #{tpu_custom_call.1} parent=1 // loop_footer_branch
      %14 = sbr.rel target = $region3
    $region8: #{tpu_custom_call.1} parent=1 // loop_exit
      _
    %247 = vsyncpa [#allocation3], 1
    %s248 = scalar_lea.sflag [#allocation3], 1
    %249 = vsyncpa %s248, 1
    %250 = vsyncpa [#allocation4], 1
    %s251 = scalar_lea.sflag [#allocation4], 1
    %252 = vsyncpa %s251, 1

</llo_original>
